<compile_context>
chip_gen: v7x
topology: tpu7x:2x2x1
jax: 0.10.0
libtpu: 0.0.40
codegen_flags: <defaults>
</compile_context>

<pallas_src>
import functools
import math

import jax
import jax.numpy as jnp
from jax.experimental import pallas as pl
from jax.experimental.pallas import tpu as pltpu


# ----------------------------- parameter init (glue, plain JAX) -----------------------------
def fast_sin(x):
    """Taylor-series fast sine, identical to FastQuantumOps.fast_sin."""
    x = x % (2.0 * jnp.pi)
    x = jnp.where(x > jnp.pi, x - 2.0 * jnp.pi, x)
    x2 = x * x
    return x * (1.0 - x2 / 6.0)


def init_patterns(dim, num_heads):
    """Deterministic buffer init, identical to FastQuantumAttention._init_patterns."""
    head_dim = dim // num_heads
    t = jnp.linspace(0.0, 2.0 * jnp.pi, head_dim, dtype=jnp.float32)
    rows = []
    for h in range(num_heads):
        phase = 2.0 * jnp.pi * h / num_heads
        rows.append(fast_sin(t + phase))
    return jnp.stack(rows)  # (H, head_dim)


# ----------------------------------- Pallas kernel (hot path) --------------------------------
def _quantum_attn_kernel(x_ref, pat_ref, o_ref, *, H, hd, scale):
    # x_ref: (D, TOK) tile — features on sublanes, tokens on lanes (lane-dense).
    # pat_ref: (D, 1) flattened head-major patterns, lane-broadcast over tokens.
    x = x_ref[...].astype(jnp.float32)            # (D, TOK)
    pat = pat_ref[...].astype(jnp.float32)        # (D, 1)
    xs = x * pat                                  # per-head pattern scaling, lane-broadcast

    # Per-head 8-sublane slabs, each (hd, TOK). Slices start at multiples of 8 sublanes
    # so they are layout-aligned (no lane relayout).
    heads = [xs[h * hd:(h + 1) * hd, :] for h in range(H)]

    # Symmetric score matrix: only H*(H+1)/2 unique sublane-reductions, each (1, TOK).
    # NOTE: H is small (4) so the fully-unrolled triangle keeps few vregs live; for large H
    # process score rows one at a time instead of keeping the whole triangle resident.
    s = [[None] * H for _ in range(H)]
    for h in range(H):
        for g in range(h, H):
            d = jnp.sum(heads[h] * heads[g], axis=0, keepdims=True) * scale  # (1, TOK)
            s[h][g] = d
            s[g][h] = d

    outs = []
    for h in range(H):
        row = s[h]
        # numerically-stable softmax over the H "key heads", all (1, TOK) lane-dense
        m = row[0]
        for g in range(1, H):
            m = jnp.maximum(m, row[g])
        e = [jnp.exp(row[g] - m) for g in range(H)]
        denom = e[0]
        for g in range(1, H):
            denom = denom + e[g]
        # deferred normalization: accumulate unnormalized output, divide once per head.
        acc = e[0] * heads[0]                     # (1,TOK) sublane-broadcast * (hd,TOK)
        for g in range(1, H):
            acc = acc + e[g] * heads[g]
        # approx=True (EUP vrcp) is a free further tweak if ~1e-3 output tolerance is OK;
        # kept exact here so the self-check below stays tight.
        inv = pl.reciprocal(denom, approx=False)  # (1, TOK)
        outs.append(acc * inv)                    # (hd, TOK)

    # Single full-tile, lane-dense (unmasked) store.
    o_ref[...] = jnp.concatenate(outs, axis=0).astype(o_ref.dtype)


# --------------------------------------- wrapper ---------------------------------------------
def _round_up(a, b):
    return (a + b - 1) // b * b


def fast_quantum_attention(x, patterns, num_heads, *, token_tile=1024):
    """x: (B, L, D) float32, patterns: (H, D // H). Returns (B, L, D)."""
    B, L, D = x.shape
    H = num_heads
    hd = D // H
    assert H * hd == D and patterns.shape == (H, hd)
    assert token_tile % 128 == 0, "token tile must be lane-aligned (multiple of 128)"
    N = B * L
    scale = 1.0 / math.sqrt(hd)

    # Tokens-on-lanes layout: present x as (D, Np). Clamp tile for tiny N, pad with zero
    # tokens (zero scores -> uniform softmax -> zero output; sliced off below).
    tile = min(token_tile, _round_up(N, 128))
    Np = _round_up(N, tile)
    x_t = x.reshape(N, D).T                                   # (D, N)
    if Np != N:
        x_t = jnp.pad(x_t, ((0, 0), (0, Np - N)))
    pat_col = patterns.reshape(D, 1)                          # head-major flatten == view(1,1,H,hd)

    # VMEM footprint is tiny (double-buffered in+out ~= 4 * tile * D * 4B), so the default
    # scoped VMEM limit is ample on v5e/v6e/v7x even at tile=1024+.
    # TODO(synk): optional bf16 I/O would halve HBM bytes for memory-bound deployments.
    out_t = pl.pallas_call(
        functools.partial(_quantum_attn_kernel, H=H, hd=hd, scale=scale),
        out_shape=jax.ShapeDtypeStruct((D, Np), x.dtype),
        grid_spec=pltpu.PrefetchScalarGridSpec(
            num_scalar_prefetch=0,
            grid=(Np // tile,),
            in_specs=[
                pl.BlockSpec((D, tile), lambda i: (0, i)),    # token tile (lane-dense)
                pl.BlockSpec((D, 1), lambda i: (0, 0)),       # patterns (resident)
            ],
            out_specs=pl.BlockSpec((D, tile), lambda i: (0, i)),
        ),
        compiler_params=pltpu.CompilerParams(dimension_semantics=("parallel",)),
    )(x_t, pat_col)

    return out_t[:, :N].T.reshape(B, L, D)


# ------------------------------------ pure-JAX reference -------------------------------------
def reference(x, patterns, num_heads):
    B, L, D = x.shape
    H = num_heads
    hd = D // H
    xh = x.reshape(B, L, H, hd) * patterns.reshape(1, 1, H, hd)
    scores = jnp.einsum("blhd,blgd->blhg", xh, xh) / math.sqrt(hd)
    attn = jax.nn.softmax(scores, axis=-1)
    out = jnp.einsum("blhg,blgd->blhd", attn, xh)
    return out.reshape(B, L, D)


if __name__ == "__main__":
    B, L, D, H = 2, 8, 32, 4  # head_dim = 8

    key = jax.random.PRNGKey(0)
    x = jax.random.normal(key, (B, L, D), dtype=jnp.float32)
    patterns = init_patterns(D, H)  # deterministic buffer, matches _init_patterns

    out = fast_quantum_attention(x, patterns, H)
    out = jax.block_until_ready(out)

    ref = reference(x, patterns, H)
    assert out.shape == (B, L, D)
    assert jnp.allclose(out, ref, atol=1e-4, rtol=1e-4), "mismatch vs pure-JAX reference"

    print("KERNEL_OK")
</pallas_src>

<mosaic_0001>
module attributes {stable_mosaic.version = 11 : i64} {
  func.func @_quantum_attn_kernel(%arg0: i32, %arg1: memref<32x128xf32, #tpu.memory_space<vmem>>, %arg2: memref<32x1xf32, #tpu.memory_space<vmem>>, %arg3: memref<32x128xf32, #tpu.memory_space<vmem>>) attributes {dimension_semantics = [#tpu.dimension_semantics<parallel>], iteration_bounds = array<i64: 1>, scalar_prefetch = 0 : i64, scratch_operands = 0 : i64, tpu.core_type = #tpu.core_type<tc>, window_params = [{transform_indices = @transform_0, window_bounds = array<i64: 32, 128>}, {pipeline_mode = #tpu.pipeline_mode<synchronous>, transform_indices = @transform_1, window_bounds = array<i64: 32, 1>}, {transform_indices = @transform_2, window_bounds = array<i64: 32, 128>}]} {
    %c0 = arith.constant 0 : index
    %c0_0 = arith.constant 0 : index
    %0 = vector.load %arg1[%c0, %c0_0] : memref<32x128xf32, #tpu.memory_space<vmem>>, vector<32x128xf32>
    %c0_1 = arith.constant 0 : index
    %c0_2 = arith.constant 0 : index
    %1 = vector.load %arg2[%c0_1, %c0_2] : memref<32x1xf32, #tpu.memory_space<vmem>>, vector<32x1xf32>
    %2 = vector.broadcast %1 : vector<32x1xf32> to vector<32x128xf32>
    %3 = arith.mulf %0, %2 : vector<32x128xf32>
    %4 = vector.extract_strided_slice %3 {offsets = [0, 0], sizes = [8, 128], strides = [1, 1]} : vector<32x128xf32> to vector<8x128xf32>
    %5 = vector.extract_strided_slice %3 {offsets = [8, 0], sizes = [8, 128], strides = [1, 1]} : vector<32x128xf32> to vector<8x128xf32>
    %6 = vector.extract_strided_slice %3 {offsets = [16, 0], sizes = [8, 128], strides = [1, 1]} : vector<32x128xf32> to vector<8x128xf32>
    %7 = vector.extract_strided_slice %3 {offsets = [24, 0], sizes = [8, 128], strides = [1, 1]} : vector<32x128xf32> to vector<8x128xf32>
    %8 = arith.mulf %4, %4 : vector<8x128xf32>
    %cst = arith.constant dense<0.000000e+00> : vector<128xf32>
    %9 = vector.multi_reduction <add>, %8, %cst [0] : vector<8x128xf32> to vector<128xf32>
    %10 = vector.shape_cast %9 : vector<128xf32> to vector<1x128xf32>
    %cst_3 = arith.constant 0.353553385 : f32
    %11 = vector.broadcast %cst_3 : f32 to vector<1x128xf32>
    %12 = arith.mulf %10, %11 : vector<1x128xf32>
    %13 = arith.mulf %4, %5 : vector<8x128xf32>
    %cst_4 = arith.constant dense<0.000000e+00> : vector<128xf32>
    %14 = vector.multi_reduction <add>, %13, %cst_4 [0] : vector<8x128xf32> to vector<128xf32>
    %15 = vector.shape_cast %14 : vector<128xf32> to vector<1x128xf32>
    %cst_5 = arith.constant 0.353553385 : f32
    %16 = vector.broadcast %cst_5 : f32 to vector<1x128xf32>
    %17 = arith.mulf %15, %16 : vector<1x128xf32>
    %18 = arith.mulf %4, %6 : vector<8x128xf32>
    %cst_6 = arith.constant dense<0.000000e+00> : vector<128xf32>
    %19 = vector.multi_reduction <add>, %18, %cst_6 [0] : vector<8x128xf32> to vector<128xf32>
    %20 = vector.shape_cast %19 : vector<128xf32> to vector<1x128xf32>
    %cst_7 = arith.constant 0.353553385 : f32
    %21 = vector.broadcast %cst_7 : f32 to vector<1x128xf32>
    %22 = arith.mulf %20, %21 : vector<1x128xf32>
    %23 = arith.mulf %4, %7 : vector<8x128xf32>
    %cst_8 = arith.constant dense<0.000000e+00> : vector<128xf32>
    %24 = vector.multi_reduction <add>, %23, %cst_8 [0] : vector<8x128xf32> to vector<128xf32>
    %25 = vector.shape_cast %24 : vector<128xf32> to vector<1x128xf32>
    %cst_9 = arith.constant 0.353553385 : f32
    %26 = vector.broadcast %cst_9 : f32 to vector<1x128xf32>
    %27 = arith.mulf %25, %26 : vector<1x128xf32>
    %28 = arith.mulf %5, %5 : vector<8x128xf32>
    %cst_10 = arith.constant dense<0.000000e+00> : vector<128xf32>
    %29 = vector.multi_reduction <add>, %28, %cst_10 [0] : vector<8x128xf32> to vector<128xf32>
    %30 = vector.shape_cast %29 : vector<128xf32> to vector<1x128xf32>
    %cst_11 = arith.constant 0.353553385 : f32
    %31 = vector.broadcast %cst_11 : f32 to vector<1x128xf32>
    %32 = arith.mulf %30, %31 : vector<1x128xf32>
    %33 = arith.mulf %5, %6 : vector<8x128xf32>
    %cst_12 = arith.constant dense<0.000000e+00> : vector<128xf32>
    %34 = vector.multi_reduction <add>, %33, %cst_12 [0] : vector<8x128xf32> to vector<128xf32>
    %35 = vector.shape_cast %34 : vector<128xf32> to vector<1x128xf32>
    %cst_13 = arith.constant 0.353553385 : f32
    %36 = vector.broadcast %cst_13 : f32 to vector<1x128xf32>
    %37 = arith.mulf %35, %36 : vector<1x128xf32>
    %38 = arith.mulf %5, %7 : vector<8x128xf32>
    %cst_14 = arith.constant dense<0.000000e+00> : vector<128xf32>
    %39 = vector.multi_reduction <add>, %38, %cst_14 [0] : vector<8x128xf32> to vector<128xf32>
    %40 = vector.shape_cast %39 : vector<128xf32> to vector<1x128xf32>
    %cst_15 = arith.constant 0.353553385 : f32
    %41 = vector.broadcast %cst_15 : f32 to vector<1x128xf32>
    %42 = arith.mulf %40, %41 : vector<1x128xf32>
    %43 = arith.mulf %6, %6 : vector<8x128xf32>
    %cst_16 = arith.constant dense<0.000000e+00> : vector<128xf32>
    %44 = vector.multi_reduction <add>, %43, %cst_16 [0] : vector<8x128xf32> to vector<128xf32>
    %45 = vector.shape_cast %44 : vector<128xf32> to vector<1x128xf32>
    %cst_17 = arith.constant 0.353553385 : f32
    %46 = vector.broadcast %cst_17 : f32 to vector<1x128xf32>
    %47 = arith.mulf %45, %46 : vector<1x128xf32>
    %48 = arith.mulf %6, %7 : vector<8x128xf32>
    %cst_18 = arith.constant dense<0.000000e+00> : vector<128xf32>
    %49 = vector.multi_reduction <add>, %48, %cst_18 [0] : vector<8x128xf32> to vector<128xf32>
    %50 = vector.shape_cast %49 : vector<128xf32> to vector<1x128xf32>
    %cst_19 = arith.constant 0.353553385 : f32
    %51 = vector.broadcast %cst_19 : f32 to vector<1x128xf32>
    %52 = arith.mulf %50, %51 : vector<1x128xf32>
    %53 = arith.mulf %7, %7 : vector<8x128xf32>
    %cst_20 = arith.constant dense<0.000000e+00> : vector<128xf32>
    %54 = vector.multi_reduction <add>, %53, %cst_20 [0] : vector<8x128xf32> to vector<128xf32>
    %55 = vector.shape_cast %54 : vector<128xf32> to vector<1x128xf32>
    %cst_21 = arith.constant 0.353553385 : f32
    %56 = vector.broadcast %cst_21 : f32 to vector<1x128xf32>
    %57 = arith.mulf %55, %56 : vector<1x128xf32>
    %58 = arith.maximumf %12, %17 : vector<1x128xf32>
    %59 = arith.maximumf %58, %22 : vector<1x128xf32>
    %60 = arith.maximumf %59, %27 : vector<1x128xf32>
    %61 = arith.subf %12, %60 : vector<1x128xf32>
    %62 = math.exp %61 : vector<1x128xf32>
    %63 = arith.subf %17, %60 : vector<1x128xf32>
    %64 = math.exp %63 : vector<1x128xf32>
    %65 = arith.subf %22, %60 : vector<1x128xf32>
    %66 = math.exp %65 : vector<1x128xf32>
    %67 = arith.subf %27, %60 : vector<1x128xf32>
    %68 = math.exp %67 : vector<1x128xf32>
    %69 = arith.addf %62, %64 : vector<1x128xf32>
    %70 = arith.addf %69, %66 : vector<1x128xf32>
    %71 = arith.addf %70, %68 : vector<1x128xf32>
    %72 = vector.broadcast %62 : vector<1x128xf32> to vector<8x128xf32>
    %73 = arith.mulf %72, %4 : vector<8x128xf32>
    %74 = vector.broadcast %64 : vector<1x128xf32> to vector<8x128xf32>
    %75 = arith.mulf %74, %5 : vector<8x128xf32>
    %76 = arith.addf %73, %75 : vector<8x128xf32>
    %77 = vector.broadcast %66 : vector<1x128xf32> to vector<8x128xf32>
    %78 = arith.mulf %77, %6 : vector<8x128xf32>
    %79 = arith.addf %76, %78 : vector<8x128xf32>
    %80 = vector.broadcast %68 : vector<1x128xf32> to vector<8x128xf32>
    %81 = arith.mulf %80, %7 : vector<8x128xf32>
    %82 = arith.addf %79, %81 : vector<8x128xf32>
    %83 = tpu.reciprocal %71 : vector<1x128xf32> -> vector<1x128xf32>
    %84 = vector.broadcast %83 : vector<1x128xf32> to vector<8x128xf32>
    %85 = arith.mulf %82, %84 : vector<8x128xf32>
    %86 = arith.maximumf %17, %32 : vector<1x128xf32>
    %87 = arith.maximumf %86, %37 : vector<1x128xf32>
    %88 = arith.maximumf %87, %42 : vector<1x128xf32>
    %89 = arith.subf %17, %88 : vector<1x128xf32>
    %90 = math.exp %89 : vector<1x128xf32>
    %91 = arith.subf %32, %88 : vector<1x128xf32>
    %92 = math.exp %91 : vector<1x128xf32>
    %93 = arith.subf %37, %88 : vector<1x128xf32>
    %94 = math.exp %93 : vector<1x128xf32>
    %95 = arith.subf %42, %88 : vector<1x128xf32>
    %96 = math.exp %95 : vector<1x128xf32>
    %97 = arith.addf %90, %92 : vector<1x128xf32>
    %98 = arith.addf %97, %94 : vector<1x128xf32>
    %99 = arith.addf %98, %96 : vector<1x128xf32>
    %100 = vector.broadcast %90 : vector<1x128xf32> to vector<8x128xf32>
    %101 = arith.mulf %100, %4 : vector<8x128xf32>
    %102 = vector.broadcast %92 : vector<1x128xf32> to vector<8x128xf32>
    %103 = arith.mulf %102, %5 : vector<8x128xf32>
    %104 = arith.addf %101, %103 : vector<8x128xf32>
    %105 = vector.broadcast %94 : vector<1x128xf32> to vector<8x128xf32>
    %106 = arith.mulf %105, %6 : vector<8x128xf32>
    %107 = arith.addf %104, %106 : vector<8x128xf32>
    %108 = vector.broadcast %96 : vector<1x128xf32> to vector<8x128xf32>
    %109 = arith.mulf %108, %7 : vector<8x128xf32>
    %110 = arith.addf %107, %109 : vector<8x128xf32>
    %111 = tpu.reciprocal %99 : vector<1x128xf32> -> vector<1x128xf32>
    %112 = vector.broadcast %111 : vector<1x128xf32> to vector<8x128xf32>
    %113 = arith.mulf %110, %112 : vector<8x128xf32>
    %114 = arith.maximumf %22, %37 : vector<1x128xf32>
    %115 = arith.maximumf %114, %47 : vector<1x128xf32>
    %116 = arith.maximumf %115, %52 : vector<1x128xf32>
    %117 = arith.subf %22, %116 : vector<1x128xf32>
    %118 = math.exp %117 : vector<1x128xf32>
    %119 = arith.subf %37, %116 : vector<1x128xf32>
    %120 = math.exp %119 : vector<1x128xf32>
    %121 = arith.subf %47, %116 : vector<1x128xf32>
    %122 = math.exp %121 : vector<1x128xf32>
    %123 = arith.subf %52, %116 : vector<1x128xf32>
    %124 = math.exp %123 : vector<1x128xf32>
    %125 = arith.addf %118, %120 : vector<1x128xf32>
    %126 = arith.addf %125, %122 : vector<1x128xf32>
    %127 = arith.addf %126, %124 : vector<1x128xf32>
    %128 = vector.broadcast %118 : vector<1x128xf32> to vector<8x128xf32>
    %129 = arith.mulf %128, %4 : vector<8x128xf32>
    %130 = vector.broadcast %120 : vector<1x128xf32> to vector<8x128xf32>
    %131 = arith.mulf %130, %5 : vector<8x128xf32>
    %132 = arith.addf %129, %131 : vector<8x128xf32>
    %133 = vector.broadcast %122 : vector<1x128xf32> to vector<8x128xf32>
    %134 = arith.mulf %133, %6 : vector<8x128xf32>
    %135 = arith.addf %132, %134 : vector<8x128xf32>
    %136 = vector.broadcast %124 : vector<1x128xf32> to vector<8x128xf32>
    %137 = arith.mulf %136, %7 : vector<8x128xf32>
    %138 = arith.addf %135, %137 : vector<8x128xf32>
    %139 = tpu.reciprocal %127 : vector<1x128xf32> -> vector<1x128xf32>
    %140 = vector.broadcast %139 : vector<1x128xf32> to vector<8x128xf32>
    %141 = arith.mulf %138, %140 : vector<8x128xf32>
    %142 = arith.maximumf %27, %42 : vector<1x128xf32>
    %143 = arith.maximumf %142, %52 : vector<1x128xf32>
    %144 = arith.maximumf %143, %57 : vector<1x128xf32>
    %145 = arith.subf %27, %144 : vector<1x128xf32>
    %146 = math.exp %145 : vector<1x128xf32>
    %147 = arith.subf %42, %144 : vector<1x128xf32>
    %148 = math.exp %147 : vector<1x128xf32>
    %149 = arith.subf %52, %144 : vector<1x128xf32>
    %150 = math.exp %149 : vector<1x128xf32>
    %151 = arith.subf %57, %144 : vector<1x128xf32>
    %152 = math.exp %151 : vector<1x128xf32>
    %153 = arith.addf %146, %148 : vector<1x128xf32>
    %154 = arith.addf %153, %150 : vector<1x128xf32>
    %155 = arith.addf %154, %152 : vector<1x128xf32>
    %156 = vector.broadcast %146 : vector<1x128xf32> to vector<8x128xf32>
    %157 = arith.mulf %156, %4 : vector<8x128xf32>
    %158 = vector.broadcast %148 : vector<1x128xf32> to vector<8x128xf32>
    %159 = arith.mulf %158, %5 : vector<8x128xf32>
    %160 = arith.addf %157, %159 : vector<8x128xf32>
    %161 = vector.broadcast %150 : vector<1x128xf32> to vector<8x128xf32>
    %162 = arith.mulf %161, %6 : vector<8x128xf32>
    %163 = arith.addf %160, %162 : vector<8x128xf32>
    %164 = vector.broadcast %152 : vector<1x128xf32> to vector<8x128xf32>
    %165 = arith.mulf %164, %7 : vector<8x128xf32>
    %166 = arith.addf %163, %165 : vector<8x128xf32>
    %167 = tpu.reciprocal %155 : vector<1x128xf32> -> vector<1x128xf32>
    %168 = vector.broadcast %167 : vector<1x128xf32> to vector<8x128xf32>
    %169 = arith.mulf %166, %168 : vector<8x128xf32>
    %170 = tpu.concatenate %85, %113, %141, %169 in 0 : vector<8x128xf32>, vector<8x128xf32>, vector<8x128xf32>, vector<8x128xf32> -> vector<32x128xf32>
    %c0_22 = arith.constant 0 : index
    %c0_23 = arith.constant 0 : index
    %171 = vector.load %arg3[%c0_22, %c0_23] : memref<32x128xf32, #tpu.memory_space<vmem>>, vector<32x128xf32>
    tpu.vector_store %arg3[%c0_22, %c0_23], %170 {strides = array<i32>} : memref<32x128xf32, #tpu.memory_space<vmem>>, vector<32x128xf32>,
    return
  }
  func.func @transform_0(%arg0: i32) -> (i32, i32) {
    %c0_i32 = arith.constant 0 : i32
    %c0_i32_0 = arith.constant 0 : i32
    return %c0_i32, %arg0 : i32, i32
  }
  func.func @transform_1(%arg0: i32) -> (i32, i32) {
    %c0_i32 = arith.constant 0 : i32
    %c0_i32_0 = arith.constant 0 : i32
    %c0_i32_1 = arith.constant 0 : i32
    return %c0_i32, %c0_i32_0 : i32, i32
  }
  func.func @transform_2(%arg0: i32) -> (i32, i32) {
    %c0_i32 = arith.constant 0 : i32
    %c0_i32_0 = arith.constant 0 : i32
    return %c0_i32, %arg0 : i32, i32
  }
}

</mosaic_0001>

<llo_original>
// kernel: tpu_custom_call.1
$region0: #{tpu_custom_call.1}
  #allocation0 [shape = 'u32[]', space=smem, size = 0x4, offset = 0x4, fixed_abs, tag = 'smem constant byte address 0x4 - core index']
  #allocation1 [shape = 'u32[144,128]{1,0:T(1,128)}', space=vmem, size = 0x12000, scoped, tag = 'internal scratch']
  %s0 = inlined_call_operand.vmem [shape: f32[32,128], index: 0, kind: input, shape index: {}]
  %s1 = inlined_call_operand.vmem [shape: f32[32,1], index: 1, kind: input, shape index: {}]
  %s2 = inlined_call_operand.hbm [shape: f32[32,128], index: 2, kind: output, shape index: {}]
  %s3 = sld [smem:[#allocation0]]
  $region18: #{tpu_custom_call.1} parent=0
    _
  %s5 = ssub.s32 1, %s3
  %s6 = scalar_select 0, %s5, %s3
  $region1: #{tpu_custom_call.1} parent=0
    #allocation2 [shape = 'u8[16384]{0}', space=vmem, size = 0x4000, scoped, tag = 'output window, operand 0, single buffered']
    #allocation3 [shape = 's32[1]{0}', space=sflag, size = 0x4, scoped, tag = 'scoped memory for tpu_custom_call.1']
    %7 = vsyncpa [#allocation3], 0
    // Predicated region
    $region2: #{tpu_custom_call.1} parent=1 // pred_check
      _
    $region3: #{tpu_custom_call.1} parent=1 // pred_check_branch
      %9 = sbr.rel (0) target = $region5
    $region4: #{tpu_custom_call.1} parent=1 // pred_region
      _
    $region5: #{tpu_custom_call.1} parent=1 // pred_fallthru
      _
    // Predicated region
    $region6: #{tpu_custom_call.1} parent=1 // pred_check
      _
    $region7: #{tpu_custom_call.1} parent=1 // pred_check_branch
      %11 = sbr.rel (0) target = $region9
    $region8: #{tpu_custom_call.1} parent=1 // pred_region
      _
    $region9: #{tpu_custom_call.1} parent=1 // pred_fallthru
      _
    %v12 = vld [vmem:[%s0] sm:$0xff]
    %v13 = vld [vmem:[%s0 + $0x8] sm:$0xff]
    %v14 = vld [vmem:[%s0 + $0x10] sm:$0xff]
    %v15 = vld [vmem:[%s0 + $0x18] sm:$0xff]
    %v16 = vld [vmem:[%s1] sm:$0xff]
    %v17 = vld [vmem:[%s1 + $0x8] sm:$0xff]
    %v18 = vld [vmem:[%s1 + $0x10] sm:$0xff]
    %v19 = vld [vmem:[%s1 + $0x18] sm:$0xff]
    %21 = vset.pattern.permute.xlu0 0
    %22 = vperm.xlu0 %21, %v16
    %v23 = vpop.permute.xlu0 %22
    %26 = vset.pattern.permute.xlu0 0
    %27 = vperm.xlu0 %26, %v17
    %v28 = vpop.permute.xlu0 %27
    %31 = vset.pattern.permute.xlu0 0
    %32 = vperm.xlu0 %31, %v18
    %v33 = vpop.permute.xlu0 %32
    %36 = vset.pattern.permute.xlu0 0
    %37 = vperm.xlu0 %36, %v19
    %v38 = vpop.permute.xlu0 %37
    %v40 = vmul.f32 %v12, %v23
    %v41 = vmul.f32 %v13, %v28
    %v42 = vmul.f32 %v14, %v33
    %v43 = vmul.f32 %v15, %v38
    %v44 = vmul.f32 %v40, %v40
    %v45 = vrot.slane %v44, 4
    %v46 = vadd.f32 %v44, %v45
    %v47 = vrot.slane %v46, 2
    %v48 = vadd.f32 %v46, %v47
    %v49 = vrot.slane %v48, 1
    %v50 = vadd.f32 %v48, %v49
    %v51 = vmul.f32 %v50, 0.35355338
    %v52 = vmul.f32 %v40, %v41
    %v53 = vrot.slane %v52, 4
    %v54 = vadd.f32 %v52, %v53
    %v55 = vrot.slane %v54, 2
    %v56 = vadd.f32 %v54, %v55
    %v57 = vrot.slane %v56, 1
    %v58 = vadd.f32 %v56, %v57
    %v59 = vmul.f32 %v58, 0.35355338
    %v60 = vmul.f32 %v40, %v42
    %v61 = vrot.slane %v60, 4
    %v62 = vadd.f32 %v60, %v61
    %v63 = vrot.slane %v62, 2
    %v64 = vadd.f32 %v62, %v63
    %v65 = vrot.slane %v64, 1
    %v66 = vadd.f32 %v64, %v65
    %v67 = vmul.f32 %v66, 0.35355338
    %v68 = vmul.f32 %v40, %v43
    %v69 = vrot.slane %v68, 4
    %v70 = vadd.f32 %v68, %v69
    %v71 = vrot.slane %v70, 2
    %v72 = vadd.f32 %v70, %v71
    %v73 = vrot.slane %v72, 1
    %v74 = vadd.f32 %v72, %v73
    %v75 = vmul.f32 %v74, 0.35355338
    %v76 = vmul.f32 %v41, %v41
    %v77 = vrot.slane %v76, 4
    %v78 = vadd.f32 %v76, %v77
    %v79 = vrot.slane %v78, 2
    %v80 = vadd.f32 %v78, %v79
    %v81 = vrot.slane %v80, 1
    %v82 = vadd.f32 %v80, %v81
    %v83 = vmul.f32 %v82, 0.35355338
    %v84 = vmul.f32 %v41, %v42
    %v85 = vrot.slane %v84, 4
    %v86 = vadd.f32 %v84, %v85
    %v87 = vrot.slane %v86, 2
    %v88 = vadd.f32 %v86, %v87
    %v89 = vrot.slane %v88, 1
    %v90 = vadd.f32 %v88, %v89
    %v91 = vmul.f32 %v90, 0.35355338
    %v92 = vmul.f32 %v41, %v43
    %v93 = vrot.slane %v92, 4
    %v94 = vadd.f32 %v92, %v93
    %v95 = vrot.slane %v94, 2
    %v96 = vadd.f32 %v94, %v95
    %v97 = vrot.slane %v96, 1
    %v98 = vadd.f32 %v96, %v97
    %v99 = vmul.f32 %v98, 0.35355338
    %v100 = vmul.f32 %v42, %v42
    %v101 = vrot.slane %v100, 4
    %v102 = vadd.f32 %v100, %v101
    %v103 = vrot.slane %v102, 2
    %v104 = vadd.f32 %v102, %v103
    %v105 = vrot.slane %v104, 1
    %v106 = vadd.f32 %v104, %v105
    %v107 = vmul.f32 %v106, 0.35355338
    %v108 = vmul.f32 %v42, %v43
    %v109 = vrot.slane %v108, 4
    %v110 = vadd.f32 %v108, %v109
    %v111 = vrot.slane %v110, 2
    %v112 = vadd.f32 %v110, %v111
    %v113 = vrot.slane %v112, 1
    %v114 = vadd.f32 %v112, %v113
    %v115 = vmul.f32 %v114, 0.35355338
    %v116 = vmul.f32 %v43, %v43
    %v117 = vrot.slane %v116, 4
    %v118 = vadd.f32 %v116, %v117
    %v119 = vrot.slane %v118, 2
    %v120 = vadd.f32 %v118, %v119
    %v121 = vrot.slane %v120, 1
    %v122 = vadd.f32 %v120, %v121
    %v123 = vmul.f32 %v122, 0.35355338
    %v124 = vmax.f32 %v51, %v59
    %v125 = vmax.f32 %v124, %v67
    %v126 = vmax.f32 %v125, %v75
    %v127 = vsub.f32 %v51, %v126
    %v128 = vmul.f32 %v127, 1.442695
    %v129 = vpow.pop %v128
    %v130 = vsub.f32 %v59, %v126
    %v131 = vmul.f32 %v130, 1.442695
    %v132 = vpow.pop %v131
    %v133 = vsub.f32 %v67, %v126
    %v134 = vmul.f32 %v133, 1.442695
    %v135 = vpow.pop %v134
    %v136 = vsub.f32 %v75, %v126
    %v137 = vmul.f32 %v136, 1.442695
    %v138 = vpow.pop %v137
    %v139 = vadd.f32 %v129, %v132
    %v140 = vadd.f32 %v139, %v135
    %v141 = vadd.f32 %v140, %v138
    %v142 = vmul.f32 %v129, %v40
    %v143 = vmul.f32 %v132, %v41
    %v144 = vadd.f32 %v142, %v143
    %v145 = vmul.f32 %v135, %v42
    %v146 = vadd.f32 %v144, %v145
    %v147 = vmul.f32 %v138, %v43
    %v148 = vadd.f32 %v146, %v147
    %v149 = vrcp.pop %v141
    %v150 = vmul.f32 %v148, %v149
    %v151 = vmax.f32 %v59, %v83
    %v152 = vmax.f32 %v151, %v91
    %v153 = vmax.f32 %v152, %v99
    %v154 = vsub.f32 %v59, %v153
    %v155 = vmul.f32 %v154, 1.442695
    %v156 = vpow.pop %v155
    %v157 = vsub.f32 %v83, %v153
    %v158 = vmul.f32 %v157, 1.442695
    %v159 = vpow.pop %v158
    %v160 = vsub.f32 %v91, %v153
    %v161 = vmul.f32 %v160, 1.442695
    %v162 = vpow.pop %v161
    %v163 = vsub.f32 %v99, %v153
    %v164 = vmul.f32 %v163, 1.442695
    %v165 = vpow.pop %v164
    %v166 = vadd.f32 %v156, %v159
    %v167 = vadd.f32 %v166, %v162
    %v168 = vadd.f32 %v167, %v165
    %v169 = vmul.f32 %v156, %v40
    %v170 = vmul.f32 %v159, %v41
    %v171 = vadd.f32 %v169, %v170
    %v172 = vmul.f32 %v162, %v42
    %v173 = vadd.f32 %v171, %v172
    %v174 = vmul.f32 %v165, %v43
    %v175 = vadd.f32 %v173, %v174
    %v176 = vrcp.pop %v168
    %v177 = vmul.f32 %v175, %v176
    %v178 = vmax.f32 %v67, %v91
    %v179 = vmax.f32 %v178, %v107
    %v180 = vmax.f32 %v179, %v115
    %v181 = vsub.f32 %v67, %v180
    %v182 = vmul.f32 %v181, 1.442695
    %v183 = vpow.pop %v182
    %v184 = vsub.f32 %v91, %v180
    %v185 = vmul.f32 %v184, 1.442695
    %v186 = vpow.pop %v185
    %v187 = vsub.f32 %v107, %v180
    %v188 = vmul.f32 %v187, 1.442695
    %v189 = vpow.pop %v188
    %v190 = vsub.f32 %v115, %v180
    %v191 = vmul.f32 %v190, 1.442695
    %v192 = vpow.pop %v191
    %v193 = vadd.f32 %v183, %v186
    %v194 = vadd.f32 %v193, %v189
    %v195 = vadd.f32 %v194, %v192
    %v196 = vmul.f32 %v183, %v40
    %v197 = vmul.f32 %v186, %v41
    %v198 = vadd.f32 %v196, %v197
    %v199 = vmul.f32 %v189, %v42
    %v200 = vadd.f32 %v198, %v199
    %v201 = vmul.f32 %v192, %v43
    %v202 = vadd.f32 %v200, %v201
    %v203 = vrcp.pop %v195
    %v204 = vmul.f32 %v202, %v203
    %v205 = vmax.f32 %v75, %v99
    %v206 = vmax.f32 %v205, %v115
    %v207 = vmax.f32 %v206, %v123
    %v208 = vsub.f32 %v75, %v207
    %v209 = vmul.f32 %v208, 1.442695
    %v210 = vpow.pop %v209
    %v211 = vsub.f32 %v99, %v207
    %v212 = vmul.f32 %v211, 1.442695
    %v213 = vpow.pop %v212
    %v214 = vsub.f32 %v115, %v207
    %v215 = vmul.f32 %v214, 1.442695
    %v216 = vpow.pop %v215
    %v217 = vsub.f32 %v123, %v207
    %v218 = vmul.f32 %v217, 1.442695
    %v219 = vpow.pop %v218
    %v220 = vadd.f32 %v210, %v213
    %v221 = vadd.f32 %v220, %v216
    %v222 = vadd.f32 %v221, %v219
    %v223 = vmul.f32 %v210, %v40
    %v224 = vmul.f32 %v213, %v41
    %v225 = vadd.f32 %v223, %v224
    %v226 = vmul.f32 %v216, %v42
    %v227 = vadd.f32 %v225, %v226
    %v228 = vmul.f32 %v219, %v43
    %v229 = vadd.f32 %v227, %v228
    %v230 = vrcp.pop %v222
    %v231 = vmul.f32 %v229, %v230
    %232 = vst [vmem:[#allocation2] sm:$0xff] %v150
    %233 = vst [vmem:[#allocation2 + $0x8] sm:$0xff] %v177
    %234 = vst [vmem:[#allocation2 + $0x10] sm:$0xff] %v204
    %235 = vst [vmem:[#allocation2 + $0x18] sm:$0xff] %v231
    // Predicated region
    $region10: #{tpu_custom_call.1} parent=1 // pred_check
      _
    $region11: #{tpu_custom_call.1} parent=1 // pred_check_branch
      %237 = sbr.rel (0) target = $region13
    $region12: #{tpu_custom_call.1} parent=1 // pred_region
      %s239 = ssub.s32 512, 512
      %240 = vsyncadd [#allocation3], %s239
      %s241 = sshll.u32 [#allocation2], 4
      %s242 = int_to_ptr.vmem [resolvable:$true] %s241
      %247 = dma.vmem_to_hbm [thread:$0]  %s242, 512, %s2, [#allocation3], 128, 128, 8
    $region13: #{tpu_custom_call.1} parent=1 // pred_fallthru
      _
    // Predicated region
    $region14: #{tpu_custom_call.1} parent=1 // pred_check
      _
    $region15: #{tpu_custom_call.1} parent=1 // pred_check_branch
      %249 = sbr.rel (0) target = $region17
    $region16: #{tpu_custom_call.1} parent=1 // pred_region
      %250 = dma.done [#allocation3], 512
    $region17: #{tpu_custom_call.1} parent=1 // pred_fallthru
      _
    %251 = vsyncpa [#allocation3], 1

</llo_original>
